<compile_context>
chip_gen: v7x
topology: tpu7x:2x2x1
jax: 0.10.0
libtpu: 0.0.40
codegen_flags: <defaults>
</compile_context>

<pallas_src>
import functools

import jax
import jax.numpy as jnp
from jax.experimental import pallas as pl
from jax.experimental.pallas import tpu as pltpu


_LANE = 128
_SUBLANE = 8


def _round_up(x, m):
    return ((x + m - 1) // m) * m


def _vmem_capacity_bytes():
    try:
        return int(pltpu.get_tpu_info().vmem_capacity_bytes)
    except Exception:
        return 64 << 20  # conservative: v7x per-TensorCore VMEM


# ----------------------------------------------------------------------------
# Pallas kernel
# ----------------------------------------------------------------------------
def _make_mlp_kernel(n_hidden, output_type, out_real, out_pad, use_bf16):
    """Fused MLP kernel closed over static config.

    Refs:
      x_ref  : (TM, d_act)                  f32 activations (zero padded)
      wh_ref : (n_hidden, d_act, d_act)     f32/bf16 hidden weight slab
      bh_ref : (n_hidden, 1, d_act)         f32 hidden bias slab
      wo_ref : (d_act, head_w)              f32/bf16 head weights (gauss: mu|sigma)
      bo_ref : (1, head_w)                  f32 head bias
      o_ref  : (TM, head_w)                 f32 output slab
    """
    dot_dtype = jnp.bfloat16 if use_bf16 else jnp.float32

    def kernel(x_ref, wh_ref, bh_ref, wo_ref, bo_ref, o_ref):
        x = x_ref[...]  # f32

        # Hidden stack: tanh(x @ W + b). Dots accumulate in f32; elementwise
        # math stays f32 (v5e VPU/EUP have no bf16 path).
        for i in range(n_hidden):
            h = jnp.dot(x.astype(dot_dtype), wh_ref[i],
                        preferred_element_type=jnp.float32) + bh_ref[i]
            x = jnp.tanh(h)

        # Head: one matmul against the (narrow) head slab.  For 'gauss', mu
        # occupies columns [0:out_real] and sigma [out_pad:out_pad+out_real].
        logits = jnp.dot(x.astype(dot_dtype), wo_ref[...],
                         preferred_element_type=jnp.float32) + bo_ref[...]

        if output_type == "gauss":
            mu = jnp.tanh(logits[:, :out_pad])
            s = logits[:, out_pad:2 * out_pad]
            # numerically stable softplus: max(s, 0) + log1p(exp(-|s|))
            sigma = jnp.maximum(s, 0.0) + jnp.log1p(jnp.exp(-jnp.abs(s)))
            o_ref[:, :out_pad] = mu.astype(o_ref.dtype)
            o_ref[:, out_pad:] = sigma.astype(o_ref.dtype)
        elif output_type == "prob":
            # mask padded feature columns so they get zero probability
            col = jax.lax.broadcasted_iota(jnp.int32, logits.shape, 1)
            masked = jnp.where(col < out_real, logits, -jnp.inf)
            m = jnp.max(masked, axis=-1, keepdims=True)
            e = jnp.exp(masked - m)
            denom = jnp.sum(e, axis=-1, keepdims=True)
            o_ref[...] = (e / denom).astype(o_ref.dtype)  # exact normalization
        else:
            o_ref[...] = logits.astype(o_ref.dtype)

    return kernel


# ----------------------------------------------------------------------------
# Forward pass (jit-cached once per MLP instance; retraces only on new shapes)
# ----------------------------------------------------------------------------
def _mlp_forward(x, w_hidden, b_hidden, w_head, b_head, *, input_dim,
                 output_dim, out_pad, d_act, n_hidden, output_type, use_bf16,
                 vmem_cap):
    batch = x.shape[0]
    head_w = w_head.shape[-1]

    # --- batch tiling -------------------------------------------------------
    batch_pad0 = _round_up(max(batch, 1), _SUBLANE)
    # Row cap targets a ~1 MiB f32 x tile (bigger tiles when d_act is small),
    # clamped to [512, 2048].
    cap = max(512, min(2048, (1 << 20) // (d_act * 4)))
    cap = _round_up(cap, _SUBLANE)
    # >= 2 grid steps whenever the batch allows it (v7x: 2 TensorCores share
    # the "parallel" axis), near-equal tiles to avoid padding waste.
    min_tiles = 2 if batch_pad0 >= 2 * _SUBLANE else 1
    n_tiles = max(min_tiles, pl.cdiv(batch_pad0, cap))
    tm = _round_up(pl.cdiv(batch_pad0, n_tiles), _SUBLANE)
    batch_pad = tm * n_tiles

    # Pad batch rows and feature lanes (jnp.pad fuses under jit).
    x_pad = jnp.pad(x.astype(jnp.float32),
                    ((0, batch_pad - batch), (0, d_act - input_dim)))

    kernel = _make_mlp_kernel(n_hidden, output_type, output_dim, out_pad,
                              use_bf16)

    # --- VMEM budget: 1x resident slabs (Buffered(1)) + 2x (x + out) tiles ---
    wbytes = (w_hidden.size * w_hidden.dtype.itemsize
              + b_hidden.size * b_hidden.dtype.itemsize
              + w_head.size * w_head.dtype.itemsize
              + b_head.size * b_head.dtype.itemsize)
    tile_bytes = tm * d_act * 4 + tm * head_w * 4
    vmem_needed = wbytes + 2 * tile_bytes + (4 << 20)  # + headroom
    vmem_limit = int(max(24 << 20, min(int(0.85 * vmem_cap), vmem_needed)))
    # TODO(synk): if the weight slab ever exceeds ~40 MiB (can't stay resident
    # on v7x's 64 MiB/TC VMEM), stream weights per layer via a second grid
    # axis / pltpu.emit_pipeline instead of a monolithic resident slab.

    resident = pl.Buffered(1)  # constant index_map -> double-buffering is waste

    out = pl.pallas_call(
        kernel,
        out_shape=jax.ShapeDtypeStruct((batch_pad, head_w), jnp.float32),
        grid_spec=pltpu.PrefetchScalarGridSpec(
            num_scalar_prefetch=0,
            grid=(n_tiles,),
            in_specs=[
                pl.BlockSpec((tm, d_act), lambda i: (i, 0)),            # x tiles
                pl.BlockSpec((n_hidden, d_act, d_act),
                             lambda i: (0, 0, 0), pipeline_mode=resident),
                pl.BlockSpec((n_hidden, 1, d_act),
                             lambda i: (0, 0, 0), pipeline_mode=resident),
                pl.BlockSpec((d_act, head_w),
                             lambda i: (0, 0), pipeline_mode=resident),
                pl.BlockSpec((1, head_w),
                             lambda i: (0, 0), pipeline_mode=resident),
            ],
            out_specs=pl.BlockSpec((tm, head_w), lambda i: (i, 0)),
        ),
        compiler_params=pltpu.CompilerParams(
            dimension_semantics=("parallel",),   # v7x: shard batch over 2 TCs
            vmem_limit_bytes=vmem_limit,
        ),
    )(x_pad, w_hidden, b_hidden, w_head, b_head)

    if output_type == "gauss":
        return (out[:batch, :output_dim],
                out[:batch, out_pad:out_pad + output_dim])
    return out[:batch, :output_dim]


# ----------------------------------------------------------------------------
# Python-side module (parameter setup = glue, compute = Pallas)
# ----------------------------------------------------------------------------
class MLP:
    def __init__(self, input, output, hidden_layers_features, output_type=None,
                 key=jax.random.PRNGKey(0), use_bf16=True):
        self.input = int(input)
        self.output = int(output)
        self.hidden = [int(h) for h in hidden_layers_features]
        self.output_type = output_type
        self.use_bf16 = use_bf16

        n_hidden = len(self.hidden)

        def linear_params(k, fan_in, fan_out):
            # PyTorch nn.Linear default init: U(-1/sqrt(fan_in), 1/sqrt(fan_in))
            kw, kb = jax.random.split(k)
            bound = 1.0 / float(fan_in) ** 0.5
            w = jax.random.uniform(kw, (fan_in, fan_out), jnp.float32, -bound, bound)
            b = jax.random.uniform(kb, (fan_out,), jnp.float32, -bound, bound)
            return w, b

        dims = [self.input] + self.hidden
        keys = jax.random.split(key, n_hidden + 2)
        self.hidden_params = [linear_params(keys[i], dims[i], dims[i + 1])
                              for i in range(n_hidden)]
        if output_type == "gauss":
            self.head_params = [linear_params(keys[-2], self.hidden[-1], self.output),
                                linear_params(keys[-1], self.hidden[-1], self.output)]
        else:
            self.head_params = [linear_params(keys[-1], self.hidden[-1], self.output)]

        # ---- pack weights: hidden slab + separate (narrow) head operand -----
        out_pad = _round_up(max(self.output, 1), _LANE)
        d_act = max(_LANE, max(_round_up(d, _LANE) for d in dims))
        head_w = 2 * out_pad if output_type == "gauss" else out_pad

        Wh = jnp.zeros((n_hidden, d_act, d_act), jnp.float32)
        Bh = jnp.zeros((n_hidden, 1, d_act), jnp.float32)
        for i, (w, b) in enumerate(self.hidden_params):
            Wh = Wh.at[i, :dims[i], :dims[i + 1]].set(w)
            Bh = Bh.at[i, 0, :dims[i + 1]].set(b)

        Wo = jnp.zeros((d_act, head_w), jnp.float32)
        Bo = jnp.zeros((1, head_w), jnp.float32)
        if output_type == "gauss":
            (w_mu, b_mu), (w_sg, b_sg) = self.head_params
            Wo = Wo.at[:self.hidden[-1], :self.output].set(w_mu)
            Bo = Bo.at[0, :self.output].set(b_mu)
            Wo = Wo.at[:self.hidden[-1], out_pad:out_pad + self.output].set(w_sg)
            Bo = Bo.at[0, out_pad:out_pad + self.output].set(b_sg)
        else:
            (w_o, b_o), = self.head_params
            Wo = Wo.at[:self.hidden[-1], :self.output].set(w_o)
            Bo = Bo.at[0, :self.output].set(b_o)

        wdt = jnp.bfloat16 if use_bf16 else jnp.float32
        self._w_hidden = Wh.astype(wdt)
        self._b_hidden = Bh
        self._w_head = Wo.astype(wdt)
        self._b_head = Bo

        # jit once; jit's shape-keyed cache handles new batch sizes
        self._forward = jax.jit(functools.partial(
            _mlp_forward,
            input_dim=self.input, output_dim=self.output,
            out_pad=out_pad, d_act=d_act, n_hidden=n_hidden,
            output_type=output_type, use_bf16=use_bf16,
            vmem_cap=_vmem_capacity_bytes()))

    def __call__(self, x):
        res = self._forward(x, self._w_hidden, self._b_hidden,
                            self._w_head, self._b_head)
        if self.output_type == "prob":
            # torch returns (x, x.detach()); detach is a no-op for forward values
            return res, res
        return res


# ----------------------------------------------------------------------------
# Pure-jnp reference for sanity checking
# ----------------------------------------------------------------------------
def _reference(mlp, x):
    h = x
    for (w, b) in mlp.hidden_params:
        h = jnp.tanh(h @ w + b)
    if mlp.output_type == "gauss":
        (w_mu, b_mu), (w_sg, b_sg) = mlp.head_params
        return jnp.tanh(h @ w_mu + b_mu), jax.nn.softplus(h @ w_sg + b_sg)
    (w_o, b_o), = mlp.head_params
    logits = h @ w_o + b_o
    if mlp.output_type == "prob":
        return jax.nn.softmax(logits, axis=-1)
    return logits


if __name__ == "__main__":
    key = jax.random.PRNGKey(0)
    kx, kx2, kp = jax.random.split(key, 3)

    batch, d_in, hidden, d_out = 4, 16, [32, 32], 8
    x = jax.random.normal(kx, (batch, d_in), jnp.float32)

    # value head (output_type=None): plain linear output (f32 path, tight tol)
    mlp_val = MLP(d_in, d_out, hidden, output_type=None, key=kp, use_bf16=False)
    y = jax.block_until_ready(mlp_val(x))
    assert jnp.allclose(y, _reference(mlp_val, x), atol=1e-5), "value head mismatch"

    # multi-tile grid path (batch spans >1 batch tile)
    x_big = jax.random.normal(kx2, (20, d_in), jnp.float32)
    y_big = jax.block_until_ready(mlp_val(x_big))
    assert jnp.allclose(y_big, _reference(mlp_val, x_big), atol=1e-5), \
        "multi-tile value head mismatch"

    # prob head: masked softmax with exact normalization
    mlp_prob = MLP(d_in, d_out, hidden, output_type="prob", key=kp, use_bf16=False)
    p, p_det = jax.block_until_ready(mlp_prob(x))
    assert jnp.allclose(p, _reference(mlp_prob, x), atol=1e-5), "prob head mismatch"
    assert jnp.allclose(jnp.sum(p, axis=-1), 1.0, atol=1e-5), "prob not normalized"

    # gauss head: (tanh(mu), softplus(sigma)) via one fused head matmul
    mlp_g = MLP(d_in, d_out, hidden, output_type="gauss", key=kp, use_bf16=False)
    mu, sigma = jax.block_until_ready(mlp_g(x))
    mu_ref, sg_ref = _reference(mlp_g, x)
    assert jnp.allclose(mu, mu_ref, atol=1e-5), "gauss mu mismatch"
    assert jnp.allclose(sigma, sg_ref, atol=1e-5), "gauss sigma mismatch"

    # default path: bf16 MXU inputs (f32 accumulation / elementwise), looser tol
    mlp_bf = MLP(d_in, d_out, hidden, output_type=None, key=kp)
    yb = jax.block_until_ready(mlp_bf(x))
    assert jnp.allclose(yb, _reference(mlp_bf, x), atol=5e-2), "bf16 head mismatch"

    print("KERNEL_OK")
</pallas_src>

<mosaic_0001>
module attributes {stable_mosaic.version = 11 : i64} {
  func.func @kernel(%arg0: i32, %arg1: memref<8x128xf32, #tpu.memory_space<vmem>>, %arg2: memref<2x128x128xf32, #tpu.memory_space<vmem>>, %arg3: memref<2x1x128xf32, #tpu.memory_space<vmem>>, %arg4: memref<128x128xf32, #tpu.memory_space<vmem>>, %arg5: memref<1x128xf32, #tpu.memory_space<vmem>>, %arg6: memref<8x128xf32, #tpu.memory_space<vmem>>) attributes {dimension_semantics = [#tpu.dimension_semantics<parallel>], iteration_bounds = array<i64: 1>, scalar_prefetch = 0 : i64, scratch_operands = 0 : i64, tpu.core_type = #tpu.core_type<tc>, window_params = [{transform_indices = @transform_0, window_bounds = array<i64: 8, 128>}, {pipeline_mode = #tpu.pipeline_mode<synchronous>, transform_indices = @transform_1, window_bounds = array<i64: 2, 128, 128>}, {pipeline_mode = #tpu.pipeline_mode<synchronous>, transform_indices = @transform_2, window_bounds = array<i64: 2, 1, 128>}, {pipeline_mode = #tpu.pipeline_mode<synchronous>, transform_indices = @transform_3, window_bounds = array<i64: 128, 128>}, {pipeline_mode = #tpu.pipeline_mode<synchronous>, transform_indices = @transform_4, window_bounds = array<i64: 1, 128>}, {transform_indices = @transform_5, window_bounds = array<i64: 8, 128>}]} {
    %c0 = arith.constant 0 : index
    %c0_0 = arith.constant 0 : index
    %0 = vector.load %arg1[%c0, %c0_0] : memref<8x128xf32, #tpu.memory_space<vmem>>, vector<8x128xf32>
    %c0_1 = arith.constant 0 : index
    %c0_2 = arith.constant 0 : index
    %c0_3 = arith.constant 0 : index
    %1 = vector.load %arg2[%c0_1, %c0_2, %c0_3] : memref<2x128x128xf32, #tpu.memory_space<vmem>>, vector<1x128x128xf32>
    %2 = vector.shape_cast %1 : vector<1x128x128xf32> to vector<128x128xf32>
    %cst = arith.constant dense<0.000000e+00> : vector<8x128xf32>
    %3 = tpu.matmul %0, %2, %cst {dimension_numbers = #tpu.dot_dimension_numbers<[1], [0], [0], [1], [0, 0, 1, 1], [], []>} : vector<8x128xf32>, vector<128x128xf32>, vector<8x128xf32> -> vector<8x128xf32>
    %c0_4 = arith.constant 0 : index
    %c0_5 = arith.constant 0 : index
    %c0_6 = arith.constant 0 : index
    %4 = vector.load %arg3[%c0_4, %c0_5, %c0_6] : memref<2x1x128xf32, #tpu.memory_space<vmem>>, vector<1x1x128xf32>
    %5 = vector.shape_cast %4 : vector<1x1x128xf32> to vector<1x128xf32>
    %6 = vector.broadcast %5 : vector<1x128xf32> to vector<8x128xf32>
    %7 = arith.addf %3, %6 : vector<8x128xf32>
    %8 = math.tanh %7 : vector<8x128xf32>
    %c1 = arith.constant 1 : index
    %c0_7 = arith.constant 0 : index
    %c0_8 = arith.constant 0 : index
    %9 = vector.load %arg2[%c1, %c0_7, %c0_8] : memref<2x128x128xf32, #tpu.memory_space<vmem>>, vector<1x128x128xf32>
    %10 = vector.shape_cast %9 : vector<1x128x128xf32> to vector<128x128xf32>
    %cst_9 = arith.constant dense<0.000000e+00> : vector<8x128xf32>
    %11 = tpu.matmul %8, %10, %cst_9 {dimension_numbers = #tpu.dot_dimension_numbers<[1], [0], [0], [1], [0, 0, 1, 1], [], []>} : vector<8x128xf32>, vector<128x128xf32>, vector<8x128xf32> -> vector<8x128xf32>
    %c1_10 = arith.constant 1 : index
    %c0_11 = arith.constant 0 : index
    %c0_12 = arith.constant 0 : index
    %12 = vector.load %arg3[%c1_10, %c0_11, %c0_12] : memref<2x1x128xf32, #tpu.memory_space<vmem>>, vector<1x1x128xf32>
    %13 = vector.shape_cast %12 : vector<1x1x128xf32> to vector<1x128xf32>
    %14 = vector.broadcast %13 : vector<1x128xf32> to vector<8x128xf32>
    %15 = arith.addf %11, %14 : vector<8x128xf32>
    %16 = math.tanh %15 : vector<8x128xf32>
    %c0_13 = arith.constant 0 : index
    %c0_14 = arith.constant 0 : index
    %17 = vector.load %arg4[%c0_13, %c0_14] : memref<128x128xf32, #tpu.memory_space<vmem>>, vector<128x128xf32>
    %cst_15 = arith.constant dense<0.000000e+00> : vector<8x128xf32>
    %18 = tpu.matmul %16, %17, %cst_15 {dimension_numbers = #tpu.dot_dimension_numbers<[1], [0], [0], [1], [0, 0, 1, 1], [], []>} : vector<8x128xf32>, vector<128x128xf32>, vector<8x128xf32> -> vector<8x128xf32>
    %c0_16 = arith.constant 0 : index
    %c0_17 = arith.constant 0 : index
    %19 = vector.load %arg5[%c0_16, %c0_17] : memref<1x128xf32, #tpu.memory_space<vmem>>, vector<1x128xf32>
    %20 = vector.broadcast %19 : vector<1x128xf32> to vector<8x128xf32>
    %21 = arith.addf %18, %20 : vector<8x128xf32>
    %c0_18 = arith.constant 0 : index
    %c0_19 = arith.constant 0 : index
    %22 = vector.load %arg6[%c0_18, %c0_19] : memref<8x128xf32, #tpu.memory_space<vmem>>, vector<8x128xf32>
    tpu.vector_store %arg6[%c0_18, %c0_19], %21 {strides = array<i32>} : memref<8x128xf32, #tpu.memory_space<vmem>>, vector<8x128xf32>,
    return
  }
  func.func @transform_0(%arg0: i32) -> (i32, i32) {
    %c0_i32 = arith.constant 0 : i32
    %c0_i32_0 = arith.constant 0 : i32
    return %arg0, %c0_i32 : i32, i32
  }
  func.func @transform_1(%arg0: i32) -> (i32, i32, i32) {
    %c0_i32 = arith.constant 0 : i32
    %c0_i32_0 = arith.constant 0 : i32
    %c0_i32_1 = arith.constant 0 : i32
    %c0_i32_2 = arith.constant 0 : i32
    return %c0_i32, %c0_i32_0, %c0_i32_1 : i32, i32, i32
  }
  func.func @transform_2(%arg0: i32) -> (i32, i32, i32) {
    %c0_i32 = arith.constant 0 : i32
    %c0_i32_0 = arith.constant 0 : i32
    %c0_i32_1 = arith.constant 0 : i32
    %c0_i32_2 = arith.constant 0 : i32
    return %c0_i32, %c0_i32_0, %c0_i32_1 : i32, i32, i32
  }
  func.func @transform_3(%arg0: i32) -> (i32, i32) {
    %c0_i32 = arith.constant 0 : i32
    %c0_i32_0 = arith.constant 0 : i32
    %c0_i32_1 = arith.constant 0 : i32
    return %c0_i32, %c0_i32_0 : i32, i32
  }
  func.func @transform_4(%arg0: i32) -> (i32, i32) {
    %c0_i32 = arith.constant 0 : i32
    %c0_i32_0 = arith.constant 0 : i32
    %c0_i32_1 = arith.constant 0 : i32
    return %c0_i32, %c0_i32_0 : i32, i32
  }
  func.func @transform_5(%arg0: i32) -> (i32, i32) {
    %c0_i32 = arith.constant 0 : i32
    %c0_i32_0 = arith.constant 0 : i32
    return %arg0, %c0_i32 : i32, i32
  }
}

</mosaic_0001>

<llo_original>
// kernel: _mlp_forward.1
$region0: #{_mlp_forward.1}
  #allocation0 [shape = 'u32[]', space=smem, size = 0x4, offset = 0x4, fixed_abs, tag = 'smem constant byte address 0x4 - core index']
  #allocation1 [shape = 'u32[144,128]{1,0:T(1,128)}', space=vmem, size = 0x12000, scoped, tag = 'internal scratch']
  %s0 = inlined_call_operand.vmem [shape: f32[8,128], index: 0, kind: input, shape index: {}]
  %s1 = inlined_call_operand.hbm [shape: f32[2,128,128], index: 1, kind: input, shape index: {}]
  %s2 = inlined_call_operand.vmem [shape: f32[2,1,128], index: 2, kind: input, shape index: {}]
  %s3 = inlined_call_operand.hbm [shape: f32[128,128], index: 3, kind: input, shape index: {}]
  %s4 = inlined_call_operand.vmem [shape: f32[1,128], index: 4, kind: input, shape index: {}]
  %s5 = inlined_call_operand.vmem [shape: f32[8,128], index: 5, kind: output, shape index: {}]
  %s6 = sld [smem:[#allocation0]]
  $region38: #{_mlp_forward.1} parent=0
    _
  %s8 = ssub.s32 1, %s6
  %s9 = scalar_select 0, %s8, %s6
  $region1: #{_mlp_forward.1} parent=0
    #allocation2 [shape = 'u8[131072]{0}', space=vmem, size = 0x20000, scoped, tag = 'input window, operand 1, single buffered']
    #allocation3 [shape = 's32[1]{0}', space=sflag, size = 0x4, scoped, tag = 'scoped memory for _mlp_forward.1']
    #allocation4 [shape = 'u8[65536]{0}', space=vmem, size = 0x10000, scoped, tag = 'input window, operand 3, single buffered']
    #allocation5 [shape = 's32[1]{0}', space=sflag, size = 0x4, scoped, tag = 'scoped memory for _mlp_forward.1']
    %10 = vsyncpa [#allocation3], 0
    %11 = vsyncpa [#allocation5], 0
    // Predicated region
    $region2: #{_mlp_forward.1} parent=1 // pred_check
      _
    $region3: #{_mlp_forward.1} parent=1 // pred_check_branch
      %13 = sbr.rel (0) target = $region5
    $region4: #{_mlp_forward.1} parent=1 // pred_region
      _
    $region5: #{_mlp_forward.1} parent=1 // pred_fallthru
      _
    // Predicated region
    $region6: #{_mlp_forward.1} parent=1 // pred_check
      _
    $region7: #{_mlp_forward.1} parent=1 // pred_check_branch
      %15 = sbr.rel (0) target = $region9
    $region8: #{_mlp_forward.1} parent=1 // pred_region
      %s17 = ssub.s32 4096, 4096
      %18 = vsyncadd [#allocation3], %s17
      %s19 = sshll.u32 [#allocation2], 4
      %s20 = int_to_ptr.vmem [resolvable:$true] %s19
      %25 = dma.hbm_to_vmem [thread:$0]  %s1, 4096, %s20, [#allocation3], 128, 128, 8
    $region9: #{_mlp_forward.1} parent=1 // pred_fallthru
      _
    // Predicated region
    $region10: #{_mlp_forward.1} parent=1 // pred_check
      _
    $region11: #{_mlp_forward.1} parent=1 // pred_check_branch
      %27 = sbr.rel (0) target = $region13
    $region12: #{_mlp_forward.1} parent=1 // pred_region
      _
    $region13: #{_mlp_forward.1} parent=1 // pred_fallthru
      _
    // Predicated region
    $region14: #{_mlp_forward.1} parent=1 // pred_check
      _
    $region15: #{_mlp_forward.1} parent=1 // pred_check_branch
      %29 = sbr.rel (0) target = $region17
    $region16: #{_mlp_forward.1} parent=1 // pred_region
      %s31 = ssub.s32 2048, 2048
      %32 = vsyncadd [#allocation5], %s31
      %s33 = sshll.u32 [#allocation4], 4
      %s34 = int_to_ptr.vmem [resolvable:$true] %s33
      %39 = dma.hbm_to_vmem [thread:$0]  %s3, 2048, %s34, [#allocation5], 128, 128, 8
    $region17: #{_mlp_forward.1} parent=1 // pred_fallthru
      _
    // Predicated region
    $region18: #{_mlp_forward.1} parent=1 // pred_check
      _
    $region19: #{_mlp_forward.1} parent=1 // pred_check_branch
      %41 = sbr.rel (0) target = $region21
    $region20: #{_mlp_forward.1} parent=1 // pred_region
      _
    $region21: #{_mlp_forward.1} parent=1 // pred_fallthru
      _
    // Predicated region
    $region22: #{_mlp_forward.1} parent=1 // pred_check
      _
    $region23: #{_mlp_forward.1} parent=1 // pred_check_branch
      %43 = sbr.rel (0) target = $region25
    $region24: #{_mlp_forward.1} parent=1 // pred_region
      %44 = dma.done [#allocation3], 4096
    $region25: #{_mlp_forward.1} parent=1 // pred_fallthru
      _
    // Predicated region
    $region26: #{_mlp_forward.1} parent=1 // pred_check
      _
    $region27: #{_mlp_forward.1} parent=1 // pred_check_branch
      %46 = sbr.rel (0) target = $region29
    $region28: #{_mlp_forward.1} parent=1 // pred_region
      %47 = dma.done [#allocation5], 2048
    $region29: #{_mlp_forward.1} parent=1 // pred_fallthru
      _
    %v48 = vld [vmem:[%s0] sm:$0xff]
    %v49 = vld [vmem:[#allocation2] sm:$0xff]
    %v50 = vld [vmem:[#allocation2 + $0x8] sm:$0xff]
    %v51 = vld [vmem:[#allocation2 + $0x10] sm:$0xff]
    %v52 = vld [vmem:[#allocation2 + $0x18] sm:$0xff]
    %v53 = vld [vmem:[#allocation2 + $0x20] sm:$0xff]
    %v54 = vld [vmem:[#allocation2 + $0x28] sm:$0xff]
    %v55 = vld [vmem:[#allocation2 + $0x30] sm:$0xff]
    %v56 = vld [vmem:[#allocation2 + $0x38] sm:$0xff]
    %v57 = vld [vmem:[#allocation2 + $0x40] sm:$0xff]
    %v58 = vld [vmem:[#allocation2 + $0x48] sm:$0xff]
    %v59 = vld [vmem:[#allocation2 + $0x50] sm:$0xff]
    %v60 = vld [vmem:[#allocation2 + $0x58] sm:$0xff]
    %v61 = vld [vmem:[#allocation2 + $0x60] sm:$0xff]
    %v62 = vld [vmem:[#allocation2 + $0x68] sm:$0xff]
    %v63 = vld [vmem:[#allocation2 + $0x70] sm:$0xff]
    %v64 = vld [vmem:[#allocation2 + $0x78] sm:$0xff]
    %v65 = vld [vmem:[%s2] sm:$0x1]
    %v67 = vlaneseq
    %v68 = vshrl.u32 %v67, 7
    %v69 = vsub.s32 0, %v68
    %v70 = vrot.slane %v65, %v69
    %72 = vmatprep.subr.mxu0 0.0
    %73 = vmatpush1.msra.mxu0 %v49
    %74 = vmatprep.subr.mxu0 0.0
    %75 = vmatpush1.msra.mxu0 %v50
    %76 = vmatprep.subr.mxu0 0.0
    %77 = vmatpush1.msra.mxu0 %v51
    %78 = vmatprep.subr.mxu0 0.0
    %79 = vmatpush1.msra.mxu0 %v52
    %80 = vmatprep.subr.mxu0 0.0
    %81 = vmatpush1.msra.mxu0 %v53
    %82 = vmatprep.subr.mxu0 0.0
    %83 = vmatpush1.msra.mxu0 %v54
    %84 = vmatprep.subr.mxu0 0.0
    %85 = vmatpush1.msra.mxu0 %v55
    %86 = vmatprep.subr.mxu0 0.0
    %87 = vmatpush1.msra.mxu0 %v56
    %88 = vmatprep.subr.mxu0 0.0
    %89 = vmatpush1.msra.mxu0 %v57
    %90 = vmatprep.subr.mxu0 0.0
    %91 = vmatpush1.msra.mxu0 %v58
    %92 = vmatprep.subr.mxu0 0.0
    %93 = vmatpush1.msra.mxu0 %v59
    %94 = vmatprep.subr.mxu0 0.0
    %95 = vmatpush1.msra.mxu0 %v60
    %96 = vmatprep.subr.mxu0 0.0
    %97 = vmatpush1.msra.mxu0 %v61
    %98 = vmatprep.subr.mxu0 0.0
    %99 = vmatpush1.msra.mxu0 %v62
    %100 = vmatprep.subr.mxu0 0.0
    %101 = vmatpush1.msra.mxu0 %v63
    %102 = vmatprep.subr.mxu0 0.0
    %103 = vmatpush1.msra.mxu0 %v64
    %104 = vmatprep.subr.mxu0 0.0
    %105 = vmatpush1.msra.mxu0 0.0
    %106 = vmatprep.subr.mxu0 0.0
    %107 = vmatpush1.msra.mxu0 0.0
    %108 = vmatprep.subr.mxu0 0.0
    %109 = vmatpush1.msra.mxu0 0.0
    %110 = vmatprep.subr.mxu0 0.0
    %111 = vmatpush1.msra.mxu0 0.0
    %112 = vmatprep.subr.mxu0 0.0
    %113 = vmatpush1.msra.mxu0 0.0
    %114 = vmatprep.subr.mxu0 0.0
    %115 = vmatpush1.msra.mxu0 0.0
    %116 = vmatprep.subr.mxu0 0.0
    %117 = vmatpush1.msra.mxu0 0.0
    %118 = vmatprep.subr.mxu0 0.0
    %119 = vmatpush1.msra.mxu0 0.0
    %120 = vmatprep.subr.mxu0 0.0
    %121 = vmatpush1.msra.mxu0 0.0
    %122 = vmatprep.subr.mxu0 0.0
    %123 = vmatpush1.msra.mxu0 0.0
    %124 = vmatprep.subr.mxu0 0.0
    %125 = vmatpush1.msra.mxu0 0.0
    %126 = vmatprep.subr.mxu0 0.0
    %127 = vmatpush1.msra.mxu0 0.0
    %128 = vmatprep.subr.mxu0 0.0
    %129 = vmatpush1.msra.mxu0 0.0
    %130 = vmatprep.subr.mxu0 0.0
    %131 = vmatpush1.msra.mxu0 0.0
    %132 = vmatprep.subr.mxu0 0.0
    %133 = vmatpush1.msra.mxu0 0.0
    %134 = vmatprep.subr.mxu0 0.0
    %135 = vmatpush1.msra.mxu0 0.0
    %136 = vmatprep.mubr.f32.mxu0 0.0
    %137 = vmatmul.mubr.f32.gmra.mrb[0].mxu0 %v48
    %v138 = vpop.f32.mrb[0].mxu0
    %v139 = vadd.f32 %v70, %v138
    %v140 = vpop.f32.mrb[0].mxu0
    %141 = vdwg.mxu0
    %v142 = vtanh.pop %v139
    %s143 = scalar_lea.vmem [#allocation2], 128
    %v144 = vld [vmem:[%s143] sm:$0xff]
    %v145 = vld [vmem:[%s143 + $0x8] sm:$0xff]
    %v146 = vld [vmem:[%s143 + $0x10] sm:$0xff]
    %v147 = vld [vmem:[%s143 + $0x18] sm:$0xff]
    %v148 = vld [vmem:[%s143 + $0x20] sm:$0xff]
    %v149 = vld [vmem:[%s143 + $0x28] sm:$0xff]
    %v150 = vld [vmem:[%s143 + $0x30] sm:$0xff]
    %v151 = vld [vmem:[%s143 + $0x38] sm:$0xff]
    %v152 = vld [vmem:[%s143 + $0x40] sm:$0xff]
    %v153 = vld [vmem:[%s143 + $0x48] sm:$0xff]
    %v154 = vld [vmem:[%s143 + $0x50] sm:$0xff]
    %v155 = vld [vmem:[%s143 + $0x58] sm:$0xff]
    %v156 = vld [vmem:[%s143 + $0x60] sm:$0xff]
    %v157 = vld [vmem:[%s143 + $0x68] sm:$0xff]
    %v158 = vld [vmem:[%s143 + $0x70] sm:$0xff]
    %v159 = vld [vmem:[%s143 + $0x78] sm:$0xff]
    %s160 = scalar_lea.vmem %s2, 1
    %v161 = vld [vmem:[%s160] sm:$0x1]
    %v163 = vlaneseq
    %v164 = vshrl.u32 %v163, 7
    %v165 = vsub.s32 0, %v164
    %v166 = vrot.slane %v161, %v165
    %168 = vmatprep.subr.mxu0 0.0
    %169 = vmatpush1.msra.mxu0 %v144
    %170 = vmatprep.subr.mxu0 0.0
    %171 = vmatpush1.msra.mxu0 %v145
    %172 = vmatprep.subr.mxu0 0.0
    %173 = vmatpush1.msra.mxu0 %v146
    %174 = vmatprep.subr.mxu0 0.0
    %175 = vmatpush1.msra.mxu0 %v147
    %176 = vmatprep.subr.mxu0 0.0
    %177 = vmatpush1.msra.mxu0 %v148
    %178 = vmatprep.subr.mxu0 0.0
    %179 = vmatpush1.msra.mxu0 %v149
    %180 = vmatprep.subr.mxu0 0.0
    %181 = vmatpush1.msra.mxu0 %v150
    %182 = vmatprep.subr.mxu0 0.0
    %183 = vmatpush1.msra.mxu0 %v151
    %184 = vmatprep.subr.mxu0 0.0
    %185 = vmatpush1.msra.mxu0 %v152
    %186 = vmatprep.subr.mxu0 0.0
    %187 = vmatpush1.msra.mxu0 %v153
    %188 = vmatprep.subr.mxu0 0.0
    %189 = vmatpush1.msra.mxu0 %v154
    %190 = vmatprep.subr.mxu0 0.0
    %191 = vmatpush1.msra.mxu0 %v155
    %192 = vmatprep.subr.mxu0 0.0
    %193 = vmatpush1.msra.mxu0 %v156
    %194 = vmatprep.subr.mxu0 0.0
    %195 = vmatpush1.msra.mxu0 %v157
    %196 = vmatprep.subr.mxu0 0.0
    %197 = vmatpush1.msra.mxu0 %v158
    %198 = vmatprep.subr.mxu0 0.0
    %199 = vmatpush1.msra.mxu0 %v159
    %200 = vmatprep.subr.mxu0 0.0
    %201 = vmatpush1.msra.mxu0 0.0
    %202 = vmatprep.subr.mxu0 0.0
    %203 = vmatpush1.msra.mxu0 0.0
    %204 = vmatprep.subr.mxu0 0.0
    %205 = vmatpush1.msra.mxu0 0.0
    %206 = vmatprep.subr.mxu0 0.0
    %207 = vmatpush1.msra.mxu0 0.0
    %208 = vmatprep.subr.mxu0 0.0
    %209 = vmatpush1.msra.mxu0 0.0
    %210 = vmatprep.subr.mxu0 0.0
    %211 = vmatpush1.msra.mxu0 0.0
    %212 = vmatprep.subr.mxu0 0.0
    %213 = vmatpush1.msra.mxu0 0.0
    %214 = vmatprep.subr.mxu0 0.0
    %215 = vmatpush1.msra.mxu0 0.0
    %216 = vmatprep.subr.mxu0 0.0
    %217 = vmatpush1.msra.mxu0 0.0
    %218 = vmatprep.subr.mxu0 0.0
    %219 = vmatpush1.msra.mxu0 0.0
    %220 = vmatprep.subr.mxu0 0.0
    %221 = vmatpush1.msra.mxu0 0.0
    %222 = vmatprep.subr.mxu0 0.0
    %223 = vmatpush1.msra.mxu0 0.0
    %224 = vmatprep.subr.mxu0 0.0
    %225 = vmatpush1.msra.mxu0 0.0
    %226 = vmatprep.subr.mxu0 0.0
    %227 = vmatpush1.msra.mxu0 0.0
    %228 = vmatprep.subr.mxu0 0.0
    %229 = vmatpush1.msra.mxu0 0.0
    %230 = vmatprep.subr.mxu0 0.0
    %231 = vmatpush1.msra.mxu0 0.0
    %232 = vmatprep.mubr.f32.mxu0 0.0
    %233 = vmatmul.mubr.f32.gmra.mrb[0].mxu0 %v142
    %v234 = vpop.f32.mrb[0].mxu0
    %v235 = vadd.f32 %v166, %v234
    %v236 = vpop.f32.mrb[0].mxu0
    %237 = vdwg.mxu0
    %v238 = vtanh.pop %v235
    %v239 = vld [vmem:[#allocation4] sm:$0xff]
    %v240 = vld [vmem:[#allocation4 + $0x8] sm:$0xff]
    %v241 = vld [vmem:[#allocation4 + $0x10] sm:$0xff]
    %v242 = vld [vmem:[#allocation4 + $0x18] sm:$0xff]
    %v243 = vld [vmem:[#allocation4 + $0x20] sm:$0xff]
    %v244 = vld [vmem:[#allocation4 + $0x28] sm:$0xff]
    %v245 = vld [vmem:[#allocation4 + $0x30] sm:$0xff]
    %v246 = vld [vmem:[#allocation4 + $0x38] sm:$0xff]
    %v247 = vld [vmem:[#allocation4 + $0x40] sm:$0xff]
    %v248 = vld [vmem:[#allocation4 + $0x48] sm:$0xff]
    %v249 = vld [vmem:[#allocation4 + $0x50] sm:$0xff]
    %v250 = vld [vmem:[#allocation4 + $0x58] sm:$0xff]
    %v251 = vld [vmem:[#allocation4 + $0x60] sm:$0xff]
    %v252 = vld [vmem:[#allocation4 + $0x68] sm:$0xff]
    %v253 = vld [vmem:[#allocation4 + $0x70] sm:$0xff]
    %v254 = vld [vmem:[#allocation4 + $0x78] sm:$0xff]
    %v255 = vld [vmem:[%s4] sm:$0x1]
    %v257 = vlaneseq
    %v258 = vshrl.u32 %v257, 7
    %v259 = vsub.s32 0, %v258
    %v260 = vrot.slane %v255, %v259
    %262 = vmatprep.subr.mxu0 0.0
    %263 = vmatpush1.msra.mxu0 %v239
    %264 = vmatprep.subr.mxu0 0.0
    %265 = vmatpush1.msra.mxu0 %v240
    %266 = vmatprep.subr.mxu0 0.0
    %267 = vmatpush1.msra.mxu0 %v241
    %268 = vmatprep.subr.mxu0 0.0
    %269 = vmatpush1.msra.mxu0 %v242
    %270 = vmatprep.subr.mxu0 0.0
    %271 = vmatpush1.msra.mxu0 %v243
    %272 = vmatprep.subr.mxu0 0.0
    %273 = vmatpush1.msra.mxu0 %v244
    %274 = vmatprep.subr.mxu0 0.0
    %275 = vmatpush1.msra.mxu0 %v245
    %276 = vmatprep.subr.mxu0 0.0
    %277 = vmatpush1.msra.mxu0 %v246
    %278 = vmatprep.subr.mxu0 0.0
    %279 = vmatpush1.msra.mxu0 %v247
    %280 = vmatprep.subr.mxu0 0.0
    %281 = vmatpush1.msra.mxu0 %v248
    %282 = vmatprep.subr.mxu0 0.0
    %283 = vmatpush1.msra.mxu0 %v249
    %284 = vmatprep.subr.mxu0 0.0
    %285 = vmatpush1.msra.mxu0 %v250
    %286 = vmatprep.subr.mxu0 0.0
    %287 = vmatpush1.msra.mxu0 %v251
    %288 = vmatprep.subr.mxu0 0.0
    %289 = vmatpush1.msra.mxu0 %v252
    %290 = vmatprep.subr.mxu0 0.0
    %291 = vmatpush1.msra.mxu0 %v253
    %292 = vmatprep.subr.mxu0 0.0
    %293 = vmatpush1.msra.mxu0 %v254
    %294 = vmatprep.subr.mxu0 0.0
    %295 = vmatpush1.msra.mxu0 0.0
    %296 = vmatprep.subr.mxu0 0.0
    %297 = vmatpush1.msra.mxu0 0.0
    %298 = vmatprep.subr.mxu0 0.0
    %299 = vmatpush1.msra.mxu0 0.0
    %300 = vmatprep.subr.mxu0 0.0
    %301 = vmatpush1.msra.mxu0 0.0
    %302 = vmatprep.subr.mxu0 0.0
    %303 = vmatpush1.msra.mxu0 0.0
    %304 = vmatprep.subr.mxu0 0.0
    %305 = vmatpush1.msra.mxu0 0.0
    %306 = vmatprep.subr.mxu0 0.0
    %307 = vmatpush1.msra.mxu0 0.0
    %308 = vmatprep.subr.mxu0 0.0
    %309 = vmatpush1.msra.mxu0 0.0
    %310 = vmatprep.subr.mxu0 0.0
    %311 = vmatpush1.msra.mxu0 0.0
    %312 = vmatprep.subr.mxu0 0.0
    %313 = vmatpush1.msra.mxu0 0.0
    %314 = vmatprep.subr.mxu0 0.0
    %315 = vmatpush1.msra.mxu0 0.0
    %316 = vmatprep.subr.mxu0 0.0
    %317 = vmatpush1.msra.mxu0 0.0
    %318 = vmatprep.subr.mxu0 0.0
    %319 = vmatpush1.msra.mxu0 0.0
    %320 = vmatprep.subr.mxu0 0.0
    %321 = vmatpush1.msra.mxu0 0.0
    %322 = vmatprep.subr.mxu0 0.0
    %323 = vmatpush1.msra.mxu0 0.0
    %324 = vmatprep.subr.mxu0 0.0
    %325 = vmatpush1.msra.mxu0 0.0
    %326 = vmatprep.mubr.f32.mxu0 0.0
    %327 = vmatmul.mubr.f32.gmra.mrb[0].mxu0 %v238
    %v328 = vpop.f32.mrb[0].mxu0
    %v329 = vadd.f32 %v260, %v328
    %v330 = vpop.f32.mrb[0].mxu0
    %331 = vdwg.mxu0
    %332 = vst [vmem:[%s5] sm:$0xff] %v329
    // Predicated region
    $region30: #{_mlp_forward.1} parent=1 // pred_check
      _
    $region31: #{_mlp_forward.1} parent=1 // pred_check_branch
      %334 = sbr.rel (0) target = $region33
    $region32: #{_mlp_forward.1} parent=1 // pred_region
      _
    $region33: #{_mlp_forward.1} parent=1 // pred_fallthru
      _
    // Predicated region
    $region34: #{_mlp_forward.1} parent=1 // pred_check
      _
    $region35: #{_mlp_forward.1} parent=1 // pred_check_branch
      %336 = sbr.rel (0) target = $region37
    $region36: #{_mlp_forward.1} parent=1 // pred_region
      _
    $region37: #{_mlp_forward.1} parent=1 // pred_fallthru
      _
    %337 = vsyncpa [#allocation3], 1
    %338 = vsyncpa [#allocation5], 1

</llo_original>
